<compile_context>
chip_gen: v7x
topology: tpu7x:2x2x1
jax: 0.10.0
libtpu: 0.0.40
codegen_flags: <defaults>
</compile_context>

<pallas_src>
import functools

import jax
import jax.numpy as jnp
from jax.experimental import pallas as pl
from jax.experimental.pallas import tpu as pltpu


_LANE_COLS = 512                    # lane-dense last dim for elementwise kernels
_VMEM_LIMIT = 32 * 1024 * 1024      # safe scoped-VMEM limit on v5e/v6e/v7x


def _round_up(n, m):
    return ((n + m - 1) // m) * m


def _choose_tile_rows(rows, row_bytes, budget_bytes=8 << 20, cap=512):
    """Largest row tile (multiple of 8, <= cap) whose working set fits budget."""
    t = max(8, min(cap, budget_bytes // max(row_bytes, 1)))
    t = (t // 8) * 8
    return min(t, _round_up(rows, 8))


# ----------------------------- LayerNorm kernel -----------------------------

def _layernorm_kernel(x_ref, a_ref, b_ref, o_ref, *, eps, n_feat):
    x = x_ref[...].astype(jnp.float32)                    # (tile_rows, feat)
    s = jnp.sum(x, axis=-1, keepdims=True)
    sq = jnp.sum(x * x, axis=-1, keepdims=True)
    mean = s * (1.0 / n_feat)
    # torch.Tensor.std default is unbiased (divide by N-1)
    var = jnp.maximum((sq - s * mean) * (1.0 / (n_feat - 1)), 0.0)
    std = jnp.sqrt(var)
    inv = 1.0 / (std + eps)                               # one divide per row
    a = a_ref[...].astype(jnp.float32)                    # (1, feat)
    b = b_ref[...].astype(jnp.float32)                    # (1, feat)
    o_ref[...] = ((x - mean) * inv * a + b).astype(o_ref.dtype)


def layernorm_pallas(x, a_2, b_2, eps=1e-6):
    orig_shape = x.shape
    feat = orig_shape[-1]
    assert feat >= 2, "unbiased std requires at least 2 features"
    x2 = x.reshape(-1, feat)
    rows = x2.shape[0]

    # ~6 f32 copies of a (tile, feat) block live at once (dbl-buffered io + temps)
    tile_rows = _choose_tile_rows(rows, row_bytes=6 * feat * 4)
    padded_rows = _round_up(rows, tile_rows)
    if padded_rows != rows:
        x2 = jnp.pad(x2, ((0, padded_rows - rows), (0, 0)))

    itemsize = jnp.dtype(x.dtype).itemsize
    out = pl.pallas_call(
        functools.partial(_layernorm_kernel, eps=eps, n_feat=feat),
        out_shape=jax.ShapeDtypeStruct((padded_rows, feat), x.dtype),
        grid_spec=pltpu.PrefetchScalarGridSpec(
            num_scalar_prefetch=0,
            grid=(padded_rows // tile_rows,),
            in_specs=[
                pl.BlockSpec((tile_rows, feat), lambda i: (i, 0)),
                pl.BlockSpec((1, feat), lambda i: (0, 0)),
                pl.BlockSpec((1, feat), lambda i: (0, 0)),
            ],
            out_specs=pl.BlockSpec((tile_rows, feat), lambda i: (i, 0)),
        ),
        compiler_params=pltpu.CompilerParams(
            dimension_semantics=("parallel",),
            vmem_limit_bytes=_VMEM_LIMIT),
        cost_estimate=pl.CostEstimate(
            flops=8 * padded_rows * feat,
            transcendentals=padded_rows,
            bytes_accessed=(2 * padded_rows * feat + 2 * feat) * itemsize),
    )(x2, a_2.reshape(1, feat), b_2.reshape(1, feat))
    return out[:rows].reshape(orig_shape)


# ---------------------- dropout + residual add kernels ----------------------

def _residual_add_kernel(x_ref, y_ref, o_ref):
    # eval mode: dropout is identity
    o_ref[...] = x_ref[...] + y_ref[...]


def _residual_dropout_add_kernel(x_ref, y_ref, bits_ref, o_ref, *, threshold, scale):
    # training mode: keep with prob (1-p), scale kept values by 1/(1-p)
    keep = bits_ref[...] >= jnp.uint32(threshold)
    y = y_ref[...].astype(jnp.float32)
    kept = jnp.where(keep, y * jnp.float32(scale), jnp.float32(0.0))
    o_ref[...] = (x_ref[...].astype(jnp.float32) + kept).astype(o_ref.dtype)


def dropout_residual_add_pallas(x, y, p, training=False, key=None):
    assert x.shape == y.shape
    orig_shape = x.shape
    total = x.size
    itemsize = jnp.dtype(x.dtype).itemsize

    # lane-dense flattening: elementwise op, so any 2D reshape is valid.
    rows = _round_up(total, _LANE_COLS) // _LANE_COLS
    tile_rows = _choose_tile_rows(rows, row_bytes=8 * _LANE_COLS * 4, cap=256)
    padded_rows = _round_up(rows, tile_rows)
    padded_total = padded_rows * _LANE_COLS

    def to2d(a):
        flat = a.reshape(-1)
        if padded_total != total:
            flat = jnp.pad(flat, (0, padded_total - total))
        return flat.reshape(padded_rows, _LANE_COLS)

    x2, y2 = to2d(x), to2d(y)
    grid = (padded_rows // tile_rows,)
    blk = pl.BlockSpec((tile_rows, _LANE_COLS), lambda i: (i, 0))
    cparams = pltpu.CompilerParams(
        dimension_semantics=("parallel",), vmem_limit_bytes=_VMEM_LIMIT)

    if (not training) or p == 0.0:
        out2 = pl.pallas_call(
            _residual_add_kernel,
            out_shape=jax.ShapeDtypeStruct((padded_rows, _LANE_COLS), x.dtype),
            grid_spec=pltpu.PrefetchScalarGridSpec(
                num_scalar_prefetch=0, grid=grid,
                in_specs=[blk, blk], out_specs=blk),
            compiler_params=cparams,
            cost_estimate=pl.CostEstimate(
                flops=padded_total, transcendentals=0,
                bytes_accessed=3 * padded_total * itemsize),
        )(x2, y2)
    else:
        assert 0.0 < p < 1.0, "dropout rate must be in [0, 1)"
        if key is None:
            # TODO(synk): callers should thread a fresh PRNG key per step; a
            # fixed default repeats the dropout mask across calls.
            key = jax.random.PRNGKey(0)
        # RNG generated in the wrapper with jax.random (the in-kernel TPU PRNG
        # has no interpret lowering); distribution matches torch dropout.
        bits = jax.random.bits(key, (padded_rows, _LANE_COLS), dtype=jnp.uint32)
        threshold = min(int(round(p * float(1 << 32))), (1 << 32) - 1)
        scale = 1.0 / (1.0 - p)
        out2 = pl.pallas_call(
            functools.partial(_residual_dropout_add_kernel,
                              threshold=threshold, scale=scale),
            out_shape=jax.ShapeDtypeStruct((padded_rows, _LANE_COLS), x.dtype),
            grid_spec=pltpu.PrefetchScalarGridSpec(
                num_scalar_prefetch=0, grid=grid,
                in_specs=[blk, blk, blk], out_specs=blk),
            compiler_params=cparams,
            cost_estimate=pl.CostEstimate(
                flops=3 * padded_total, transcendentals=0,
                bytes_accessed=3 * padded_total * itemsize + 4 * padded_total),
        )(x2, y2, bits)

    return out2.reshape(-1)[:total].reshape(orig_shape)


# --------------------------- module-level wrapper ----------------------------

class SublayerConnectionPallas:
    """Residual connection with pre-LayerNorm, mirroring the PyTorch module."""

    def __init__(self, size, dropout):
        # deterministic init, same as the PyTorch __init__
        self.a_2 = jnp.ones((size,), jnp.float32)
        self.b_2 = jnp.zeros((size,), jnp.float32)
        self.eps = 1e-6
        self.p = float(dropout)

    def __call__(self, x, sublayer, training=False, rng_key=None):
        normed = layernorm_pallas(x, self.a_2, self.b_2, self.eps)
        y = sublayer(normed)
        # TODO(synk): for further HBM savings, fuse the residual add into the
        # sublayer's epilogue when the sublayer is a known matmul.
        return dropout_residual_add_pallas(x, y, self.p, training=training,
                                           key=rng_key)


# ----------------------------------- main ------------------------------------

if __name__ == "__main__":
    batch, seq, hidden = 2, 8, 32
    key = jax.random.PRNGKey(0)
    kx, kw, kb, kdrop = jax.random.split(key, 4)

    x = jax.random.normal(kx, (batch, seq, hidden), dtype=jnp.float32)

    # deterministic "sublayer": a simple linear layer (plain-JAX glue)
    w = jax.random.normal(kw, (hidden, hidden), dtype=jnp.float32) * 0.05
    b = jax.random.normal(kb, (hidden,), dtype=jnp.float32) * 0.01
    sublayer = lambda h: jnp.einsum("bsf,fg->bsg", h, w) + b

    mod = SublayerConnectionPallas(size=hidden, dropout=0.1)

    # eval mode (dropout = identity), deterministic
    out = jax.block_until_ready(mod(x, sublayer, training=False))

    # pure-JAX reference for correctness (eval mode)
    mean = jnp.mean(x, axis=-1, keepdims=True)
    std = jnp.std(x, axis=-1, keepdims=True, ddof=1)
    normed_ref = mod.a_2 * (x - mean) / (std + mod.eps) + mod.b_2
    ref = x + sublayer(normed_ref)
    assert jnp.allclose(out, ref, atol=1e-4, rtol=1e-4), "mismatch vs reference"

    # exercise the training-mode (dropout) kernel once
    out_train = jax.block_until_ready(
        mod(x, sublayer, training=True, rng_key=kdrop))
    assert out_train.shape == x.shape
    assert bool(jnp.all(jnp.isfinite(out_train)))

    print("KERNEL_OK")
</pallas_src>

<mosaic_0001>
module attributes {stable_mosaic.version = 11 : i64} {
  func.func @_layernorm_kernel(%arg0: i32, %arg1: memref<16x32xf32, #tpu.memory_space<vmem>>, %arg2: memref<1x32xf32, #tpu.memory_space<vmem>>, %arg3: memref<1x32xf32, #tpu.memory_space<vmem>>, %arg4: memref<16x32xf32, #tpu.memory_space<vmem>>) attributes {dimension_semantics = [#tpu.dimension_semantics<parallel>], iteration_bounds = array<i64: 1>, scalar_prefetch = 0 : i64, scratch_operands = 0 : i64, tpu.core_type = #tpu.core_type<tc>, window_params = [{transform_indices = @transform_0, window_bounds = array<i64: 16, 32>}, {pipeline_mode = #tpu.pipeline_mode<synchronous>, transform_indices = @transform_1, window_bounds = array<i64: 1, 32>}, {pipeline_mode = #tpu.pipeline_mode<synchronous>, transform_indices = @transform_2, window_bounds = array<i64: 1, 32>}, {transform_indices = @transform_3, window_bounds = array<i64: 16, 32>}]} {
    %c0 = arith.constant 0 : index
    %c0_0 = arith.constant 0 : index
    %0 = vector.load %arg1[%c0, %c0_0] : memref<16x32xf32, #tpu.memory_space<vmem>>, vector<16x32xf32>
    %cst = arith.constant dense<0.000000e+00> : vector<16xf32>
    %1 = vector.multi_reduction <add>, %0, %cst [1] : vector<16x32xf32> to vector<16xf32>
    %2 = vector.shape_cast %1 : vector<16xf32> to vector<16x1xf32>
    %3 = arith.mulf %0, %0 : vector<16x32xf32>
    %cst_1 = arith.constant dense<0.000000e+00> : vector<16xf32>
    %4 = vector.multi_reduction <add>, %3, %cst_1 [1] : vector<16x32xf32> to vector<16xf32>
    %5 = vector.shape_cast %4 : vector<16xf32> to vector<16x1xf32>
    %cst_2 = arith.constant 3.125000e-02 : f32
    %6 = vector.broadcast %cst_2 : f32 to vector<16x1xf32>
    %7 = arith.mulf %2, %6 : vector<16x1xf32>
    %8 = arith.mulf %2, %7 : vector<16x1xf32>
    %9 = arith.subf %5, %8 : vector<16x1xf32>
    %cst_3 = arith.constant 0.0322580636 : f32
    %10 = vector.broadcast %cst_3 : f32 to vector<16x1xf32>
    %11 = arith.mulf %9, %10 : vector<16x1xf32>
    %cst_4 = arith.constant 0.000000e+00 : f32
    %12 = vector.broadcast %cst_4 : f32 to vector<16x1xf32>
    %13 = arith.maximumf %11, %12 : vector<16x1xf32>
    %14 = math.sqrt %13 : vector<16x1xf32>
    %cst_5 = arith.constant 9.99999997E-7 : f32
    %15 = vector.broadcast %cst_5 : f32 to vector<16x1xf32>
    %16 = arith.addf %14, %15 : vector<16x1xf32>
    %cst_6 = arith.constant 1.000000e+00 : f32
    %17 = vector.broadcast %cst_6 : f32 to vector<16x1xf32>
    %18 = arith.divf %17, %16 : vector<16x1xf32>
    %c0_7 = arith.constant 0 : index
    %c0_8 = arith.constant 0 : index
    %19 = vector.load %arg2[%c0_7, %c0_8] : memref<1x32xf32, #tpu.memory_space<vmem>>, vector<1x32xf32>
    %c0_9 = arith.constant 0 : index
    %c0_10 = arith.constant 0 : index
    %20 = vector.load %arg3[%c0_9, %c0_10] : memref<1x32xf32, #tpu.memory_space<vmem>>, vector<1x32xf32>
    %21 = vector.broadcast %7 : vector<16x1xf32> to vector<16x32xf32>
    %22 = arith.subf %0, %21 : vector<16x32xf32>
    %23 = vector.broadcast %18 : vector<16x1xf32> to vector<16x32xf32>
    %24 = arith.mulf %22, %23 : vector<16x32xf32>
    %25 = vector.broadcast %19 : vector<1x32xf32> to vector<16x32xf32>
    %26 = arith.mulf %24, %25 : vector<16x32xf32>
    %27 = vector.broadcast %20 : vector<1x32xf32> to vector<16x32xf32>
    %28 = arith.addf %26, %27 : vector<16x32xf32>
    %c0_11 = arith.constant 0 : index
    %c0_12 = arith.constant 0 : index
    %29 = vector.load %arg4[%c0_11, %c0_12] : memref<16x32xf32, #tpu.memory_space<vmem>>, vector<16x32xf32>
    tpu.vector_store %arg4[%c0_11, %c0_12], %28 {strides = array<i32>} : memref<16x32xf32, #tpu.memory_space<vmem>>, vector<16x32xf32>,
    return
  }
  func.func @transform_0(%arg0: i32) -> (i32, i32) {
    %c0_i32 = arith.constant 0 : i32
    %c0_i32_0 = arith.constant 0 : i32
    return %arg0, %c0_i32 : i32, i32
  }
  func.func @transform_1(%arg0: i32) -> (i32, i32) {
    %c0_i32 = arith.constant 0 : i32
    %c0_i32_0 = arith.constant 0 : i32
    %c0_i32_1 = arith.constant 0 : i32
    return %c0_i32, %c0_i32_0 : i32, i32
  }
  func.func @transform_2(%arg0: i32) -> (i32, i32) {
    %c0_i32 = arith.constant 0 : i32
    %c0_i32_0 = arith.constant 0 : i32
    %c0_i32_1 = arith.constant 0 : i32
    return %c0_i32, %c0_i32_0 : i32, i32
  }
  func.func @transform_3(%arg0: i32) -> (i32, i32) {
    %c0_i32 = arith.constant 0 : i32
    %c0_i32_0 = arith.constant 0 : i32
    return %arg0, %c0_i32 : i32, i32
  }
}

</mosaic_0001>

<llo_original>
// kernel: tpu_custom_call.1
$region0: #{tpu_custom_call.1}
  #allocation0 [shape = 'u32[]', space=smem, size = 0x4, offset = 0x4, fixed_abs, tag = 'smem constant byte address 0x4 - core index']
  #allocation1 [shape = 'u32[144,128]{1,0:T(1,128)}', space=vmem, size = 0x12000, scoped, tag = 'internal scratch']
  %s0 = inlined_call_operand.hbm [shape: f32[16,32], index: 0, kind: input, shape index: {}]
  %s1 = inlined_call_operand.vmem [shape: f32[1,32], index: 1, kind: input, shape index: {}]
  %s2 = inlined_call_operand.vmem [shape: f32[1,32], index: 2, kind: input, shape index: {}]
  %s3 = inlined_call_operand.hbm [shape: f32[16,32], index: 3, kind: output, shape index: {}]
  %s4 = sld [smem:[#allocation0]]
  $region26: #{tpu_custom_call.1} parent=0
    _
  %s6 = ssub.s32 1, %s4
  %s7 = scalar_select 0, %s6, %s4
  $region1: #{tpu_custom_call.1} parent=0
    #allocation2 [shape = 'u8[8192]{0}', space=vmem, size = 0x2000, scoped, tag = 'input window, operand 0, single buffered']
    #allocation3 [shape = 's32[1]{0}', space=sflag, size = 0x4, scoped, tag = 'scoped memory for tpu_custom_call.1']
    #allocation4 [shape = 's32[1]{0}', space=sflag, size = 0x4, scoped, tag = 'scoped memory for tpu_custom_call.1']
    #allocation5 [shape = 'u8[8192]{0}', space=vmem, size = 0x2000, scoped, tag = 'output window, operand 0, single buffered']
    %8 = vsyncpa [#allocation3], 0
    %9 = vsyncpa [#allocation4], 0
    // Predicated region
    $region2: #{tpu_custom_call.1} parent=1 // pred_check
      _
    $region3: #{tpu_custom_call.1} parent=1 // pred_check_branch
      %11 = sbr.rel (0) target = $region5
    $region4: #{tpu_custom_call.1} parent=1 // pred_region
      %s13 = ssub.s32 256, 256
      %14 = vsyncadd [#allocation3], %s13
      %s15 = sshll.u32 [#allocation2], 4
      %s16 = int_to_ptr.vmem [resolvable:$true] %s15
      %21 = dma.hbm_to_vmem [thread:$0]  %s0, 256, %s16, [#allocation3], 128, 128, 8
    $region5: #{tpu_custom_call.1} parent=1 // pred_fallthru
      _
    // Predicated region
    $region6: #{tpu_custom_call.1} parent=1 // pred_check
      _
    $region7: #{tpu_custom_call.1} parent=1 // pred_check_branch
      %23 = sbr.rel (0) target = $region9
    $region8: #{tpu_custom_call.1} parent=1 // pred_region
      _
    $region9: #{tpu_custom_call.1} parent=1 // pred_fallthru
      _
    // Predicated region
    $region10: #{tpu_custom_call.1} parent=1 // pred_check
      _
    $region11: #{tpu_custom_call.1} parent=1 // pred_check_branch
      %25 = sbr.rel (0) target = $region13
    $region12: #{tpu_custom_call.1} parent=1 // pred_region
      _
    $region13: #{tpu_custom_call.1} parent=1 // pred_fallthru
      _
    // Predicated region
    $region14: #{tpu_custom_call.1} parent=1 // pred_check
      _
    $region15: #{tpu_custom_call.1} parent=1 // pred_check_branch
      %27 = sbr.rel (0) target = $region17
    $region16: #{tpu_custom_call.1} parent=1 // pred_region
      %28 = dma.done [#allocation3], 256
    $region17: #{tpu_custom_call.1} parent=1 // pred_fallthru
      _
    %v29 = vld [vmem:[#allocation2] sm:$0xff]
    %v30 = vld [vmem:[#allocation2 + $0x8] sm:$0xff]
    %vm31 = vcmask 261120
    %v32 = vsel %vm31, %v29, 0.0
    %33 = vadd.xlane.f32.xlu0 %v32
    %v34 = vpop.xlane.xlu0 %33
    %v35 = vsel %vm31, %v30, 0.0
    %36 = vadd.xlane.f32.xlu0 %v35
    %v37 = vpop.xlane.xlu0 %36
    %v38 = vmul.f32 %v29, %v29
    %v39 = vmul.f32 %v30, %v30
    %v40 = vsel %vm31, %v38, 0.0
    %41 = vadd.xlane.f32.xlu0 %v40
    %v42 = vpop.xlane.xlu0 %41
    %v43 = vsel %vm31, %v39, 0.0
    %44 = vadd.xlane.f32.xlu0 %v43
    %v45 = vpop.xlane.xlu0 %44
    %v46 = vmul.f32 %v34, 0.03125
    %v47 = vmul.f32 %v37, 0.03125
    %v48 = vmul.f32 %v34, %v46
    %v49 = vmul.f32 %v37, %v47
    %v50 = vsub.f32 %v42, %v48
    %v51 = vsub.f32 %v45, %v49
    %v52 = vmul.f32 %v50, 0.032258064
    %v53 = vmul.f32 %v51, 0.032258064
    %v54 = vmax.f32 %v52, 0.0
    %v55 = vmax.f32 %v53, 0.0
    %v56 = vrsqrt.pop %v54
    %v57 = vmul.f32 %v54, %v56
    %vm58 = vcmp.eq.f32.partialorder %v54, inf
    %v59 = vsel %vm58, %v54, %v57
    %vm60 = vcmp.eq.f32.partialorder %v54, 0.0
    %v61 = vand.u32 %v54, 2147483648
    %v62 = vsel %vm60, %v61, %v59
    %v63 = vrsqrt.pop %v55
    %v64 = vmul.f32 %v55, %v63
    %vm65 = vcmp.eq.f32.partialorder %v55, inf
    %v66 = vsel %vm65, %v55, %v64
    %vm67 = vcmp.eq.f32.partialorder %v55, 0.0
    %v68 = vand.u32 %v55, 2147483648
    %v69 = vsel %vm67, %v68, %v66
    %v70 = vadd.f32 %v62, 1e-06
    %v71 = vadd.f32 %v69, 1e-06
    %v72 = vrcp.pop %v70
    %v73 = vmul.f32 1.0, %v72
    %v74 = vrcp.pop %v71
    %v75 = vmul.f32 1.0, %v74
    %v76 = vld [vmem:[%s1] sm:$0x1]
    %v77 = vld [vmem:[%s2] sm:$0x1]
    %v78 = vsub.f32 %v29, %v46
    %v79 = vsub.f32 %v30, %v47
    %v80 = vmul.f32 %v78, %v73
    %v81 = vmul.f32 %v79, %v75
    %v83 = vlaneseq
    %v84 = vshrl.u32 %v83, 7
    %v85 = vsub.s32 0, %v84
    %v86 = vrot.slane %v76, %v85
    %v88 = vmul.f32 %v80, %v86
    %v89 = vmul.f32 %v81, %v86
    %v91 = vlaneseq
    %v92 = vshrl.u32 %v91, 7
    %v93 = vsub.s32 0, %v92
    %v94 = vrot.slane %v77, %v93
    %v96 = vadd.f32 %v88, %v94
    %v97 = vadd.f32 %v89, %v94
    %98 = vst.msk [vmem:[#allocation5] sm:$0xff] %vm31, %v96
    %99 = vst.msk [vmem:[#allocation5 + $0x8] sm:$0xff] %vm31, %v97
    // Predicated region
    $region18: #{tpu_custom_call.1} parent=1 // pred_check
      _
    $region19: #{tpu_custom_call.1} parent=1 // pred_check_branch
      %101 = sbr.rel (0) target = $region21
    $region20: #{tpu_custom_call.1} parent=1 // pred_region
      %s103 = ssub.s32 256, 256
      %104 = vsyncadd [#allocation4], %s103
      %s105 = sshll.u32 [#allocation5], 4
      %s106 = int_to_ptr.vmem [resolvable:$true] %s105
      %111 = dma.vmem_to_hbm [thread:$0]  %s106, 256, %s3, [#allocation4], 128, 128, 8
    $region21: #{tpu_custom_call.1} parent=1 // pred_fallthru
      _
    // Predicated region
    $region22: #{tpu_custom_call.1} parent=1 // pred_check
      _
    $region23: #{tpu_custom_call.1} parent=1 // pred_check_branch
      %113 = sbr.rel (0) target = $region25
    $region24: #{tpu_custom_call.1} parent=1 // pred_region
      %114 = dma.done [#allocation4], 256
    $region25: #{tpu_custom_call.1} parent=1 // pred_fallthru
      _
    %115 = vsyncpa [#allocation3], 1
    %116 = vsyncpa [#allocation4], 1

</llo_original>
